<compile_context>
chip_gen: v7x
topology: tpu7x:2x2x1
jax: 0.10.0
libtpu: 0.0.40
codegen_flags: <defaults>
</compile_context>

<pallas_src>
import functools

import jax
import jax.numpy as jnp
from jax.experimental import pallas as pl
from jax.experimental.pallas import tpu as pltpu

_EPS = 1e-6                     # torch F.pairwise_distance default eps
_MASK_VALUE = 1e30              # baked-in mask value for padded negatives
_VMEM_LIMIT = 48 * 1024 * 1024  # safe on v7x (64 MiB phys); raises v5e/v6e scoped default
_TILE_BUDGET = 40 * 1024 * 1024 # tile footprint target, leaves headroom under the limit


def _round_up(x: int, m: int) -> int:
    return (x + m - 1) // m * m


def _pick_row_tile(b: int, max_tile: int) -> int:
    """Row tile: as big as allowed, but >=2 row blocks when both halves are >=128 rows
    (so the 'parallel' row axis shards across v7x's 2 TensorCores)."""
    n_blocks = max(1, -(-b // max_tile))
    if n_blocks == 1 and b >= 256:
        n_blocks = 2
    tb = _round_up(-(-b // n_blocks), 8)
    return min(tb, _round_up(b, 8))


def _fit_hard_tiles(tb: int, tk: int, d: int, budget: int):
    """Shrink tiles until double-buffered blocks fit the VMEM budget (f32 upper bound)."""
    def usage(tb_, tk_):
        # double-buffered a, p, n, c inputs + resident output + 3 scratch columns
        return 4 * (2 * (2 * tb_ * d + tk_ * d + tk_) + 4 * tb_)
    while usage(tb, tk) > budget and (tb > 128 or tk > 128):
        if tb >= tk and tb > 128:
            tb = max(128, _round_up(tb // 2, 8))
        else:
            tk = max(128, _round_up(tk // 2, 8))
    return tb, tk


def _fit_plain_tile(tb: int, d: int, budget: int) -> int:
    while 4 * (2 * 3 * tb * d + 2 * tb) > budget and tb > 128:
        tb = max(128, _round_up(tb // 2, 8))
    return tb


def _hard_mining_kernel(a_ref, p_ref, c_ref, n_ref, loss_ref,
                        min_ref, aterm_ref, pos_ref, *, margin, eps, true_d):
    """Grid = (row blocks i [parallel], negative blocks k [arbitrary reduction])."""
    k = pl.program_id(1)

    # k == 0 sits in pipeline warm-up: do all anchor-only (j-independent) work here.
    @pl.when(k == 0)
    def _init():
        a_f = a_ref[...].astype(jnp.float32)
        p_f = p_ref[...].astype(jnp.float32)
        # ||a_i||^2 + 2*eps*sum_d a_id  (j-independent part of ||a_i - n_j + eps||^2)
        aterm_ref[...] = jnp.sum(a_f * (a_f + 2.0 * eps), axis=-1, keepdims=True)
        d_ap = a_f - p_f + eps
        pos_ref[...] = jnp.sqrt(jnp.sum(d_ap * d_ap, axis=-1, keepdims=True))
        min_ref[...] = jnp.full_like(min_ref, _MASK_VALUE)

    # ---- inner-loop work: one MXU matmul + one VPU subtract + one XLU row-min -------
    # cross[i, j] = a_i . n_j (native-dtype operands, f32 accumulation, RHS contracted
    # on its last dim -> `negative` is never transposed).
    cross = jax.lax.dot_general(
        a_ref[...], n_ref[...],
        dimension_numbers=(((1,), (1,)), ((), ())),
        preferred_element_type=jnp.float32)                        # (TB, TK)
    # 0.5 * (j-dependent part of the squared distance); c is precomputed + pre-masked.
    scores = c_ref[...] - cross                                    # (1,TK) bcast - (TB,TK)
    tile_min = jnp.min(scores, axis=-1, keepdims=True)             # (TB, 1)
    min_ref[...] = jnp.minimum(min_ref[...], tile_min)

    # ---- finalize: min + 2 sqrt-free adds + sqrt + relu per row ----------------------
    @pl.when(k == pl.num_programs(1) - 1)
    def _finalize():
        neg_sq = jnp.maximum(
            2.0 * min_ref[...] + aterm_ref[...] + true_d * eps * eps, 0.0)
        neg_dist = jnp.sqrt(neg_sq)
        loss_ref[...] = jnp.maximum(pos_ref[...] - neg_dist + margin, 0.0)


def _plain_kernel(a_ref, p_ref, n_ref, loss_ref, *, margin, eps):
    """No hard-negative mining: elementwise distances, purely HBM-bandwidth bound."""
    a = a_ref[...].astype(jnp.float32)
    p = p_ref[...].astype(jnp.float32)
    n = n_ref[...].astype(jnp.float32)
    dap = a - p + eps
    dan = a - n + eps
    pos = jnp.sqrt(jnp.sum(dap * dap, axis=-1, keepdims=True))
    neg = jnp.sqrt(jnp.sum(dan * dan, axis=-1, keepdims=True))
    loss_ref[...] = jnp.maximum(pos - neg + margin, 0.0)


def triplet_loss(anchor, positive, negative, *, margin=0.3,
                 hard_negative_mining=True, block_rows=512, block_neg=256):
    """Pallas TPU implementation of TripletLoss.forward. Returns a scalar f32."""
    assert anchor.shape == positive.shape == negative.shape and anchor.ndim == 2
    b, d = anchor.shape

    def pad_rows(x, target):
        if x.shape[0] == target:
            return x
        return jnp.pad(x, ((0, target - x.shape[0]), (0, 0)))

    if hard_negative_mining:
        tb = _pick_row_tile(b, block_rows)
        tk = min(block_neg, _round_up(b, 8))
        tb, tk = _fit_hard_tiles(tb, tk, d, _TILE_BUDGET)
        if tk < _round_up(b, 8):
            # multi-block negative axis: keep the (1, tk) c-blocks lane-aligned
            tk = max(128, (tk // 128) * 128)
        rows_pad = _round_up(b, tb)
        negs_pad = _round_up(b, tk)

        a = pad_rows(anchor, rows_pad)
        p = pad_rows(positive, rows_pad)
        n = pad_rows(negative, negs_pad)

        # Per-negative constant, hoisted out of the kernel (read negatives once, tiny):
        #   c_half[j] = 0.5*||n_j||^2 - eps*sum_d n_jd ; padded entries masked to +big.
        n_f = n.astype(jnp.float32)
        c_half = 0.5 * jnp.sum(n_f * n_f, axis=-1) - _EPS * jnp.sum(n_f, axis=-1)
        valid = jnp.arange(negs_pad) < b
        c_half = jnp.where(valid, c_half, _MASK_VALUE).reshape(1, negs_pad)

        # Small D => per-step MXU work is short: deepen negative-stream pipelining.
        if d <= 256 and negs_pad // tk >= 3:
            neg_spec = pl.BlockSpec((tk, d), lambda i, k: (k, 0),
                                    pipeline_mode=pl.Buffered(3))
        else:
            neg_spec = pl.BlockSpec((tk, d), lambda i, k: (k, 0))

        kernel = functools.partial(_hard_mining_kernel, margin=float(margin),
                                   eps=_EPS, true_d=float(d))
        losses = pl.pallas_call(
            kernel,
            out_shape=jax.ShapeDtypeStruct((rows_pad, 1), jnp.float32),
            grid_spec=pltpu.PrefetchScalarGridSpec(
                num_scalar_prefetch=0,
                grid=(rows_pad // tb, negs_pad // tk),
                in_specs=[
                    pl.BlockSpec((tb, d), lambda i, k: (i, 0)),   # anchor
                    pl.BlockSpec((tb, d), lambda i, k: (i, 0)),   # positive
                    pl.BlockSpec((1, tk), lambda i, k: (0, k)),   # c_half (precomputed)
                    neg_spec,                                     # negative
                ],
                out_specs=pl.BlockSpec((tb, 1), lambda i, k: (i, 0)),
                scratch_shapes=[
                    pltpu.VMEM((tb, 1), jnp.float32),   # running min of scores
                    pltpu.VMEM((tb, 1), jnp.float32),   # anchor-only squared term
                    pltpu.VMEM((tb, 1), jnp.float32),   # pos_dist
                ],
            ),
            compiler_params=pltpu.CompilerParams(
                dimension_semantics=("parallel", "arbitrary"),
                vmem_limit_bytes=_VMEM_LIMIT,
            ),
        )(a, p, c_half, n)
    else:
        tb = _pick_row_tile(b, max(block_rows, 1024))
        tb = _fit_plain_tile(tb, d, _TILE_BUDGET)
        rows_pad = _round_up(b, tb)
        a = pad_rows(anchor, rows_pad)
        p = pad_rows(positive, rows_pad)
        n = pad_rows(negative, rows_pad)
        kernel = functools.partial(_plain_kernel, margin=float(margin), eps=_EPS)
        losses = pl.pallas_call(
            kernel,
            out_shape=jax.ShapeDtypeStruct((rows_pad, 1), jnp.float32),
            grid_spec=pltpu.PrefetchScalarGridSpec(
                num_scalar_prefetch=0,
                grid=(rows_pad // tb,),
                in_specs=[pl.BlockSpec((tb, d), lambda i: (i, 0))] * 3,
                out_specs=pl.BlockSpec((tb, 1), lambda i: (i, 0)),
            ),
            compiler_params=pltpu.CompilerParams(
                dimension_semantics=("parallel",),
                vmem_limit_bytes=_VMEM_LIMIT,
            ),
        )(a, p, n)

    # Per-row losses -> scalar mean (drop padded anchor rows).
    return jnp.mean(losses[:b, 0])


def _reference_triplet_loss(anchor, positive, negative, margin=0.3, hard=True):
    """Pure-JAX reference mirroring the PyTorch module (sanity check only)."""
    a = anchor.astype(jnp.float32)
    p = positive.astype(jnp.float32)
    n = negative.astype(jnp.float32)
    pos = jnp.linalg.norm(a - p + _EPS, axis=-1)
    if hard:
        dmat = jnp.linalg.norm(a[:, None, :] - n[None, :, :] + _EPS, axis=-1)
        idx = jnp.argmin(dmat, axis=-1)
        hard_neg = n[idx]
        neg = jnp.linalg.norm(a - hard_neg + _EPS, axis=-1)
    else:
        neg = jnp.linalg.norm(a - n + _EPS, axis=-1)
    return jnp.mean(jnp.maximum(pos - neg + margin, 0.0))


if __name__ == "__main__":
    key = jax.random.PRNGKey(0)

    # Small embedding batch consistent with the module's forward.
    B, D = 8, 32
    ka, kp, kn = jax.random.split(key, 3)
    anchor = jax.random.normal(ka, (B, D), dtype=jnp.float32)
    positive = jax.random.normal(kp, (B, D), dtype=jnp.float32)
    negative = jax.random.normal(kn, (B, D), dtype=jnp.float32)

    # Hard-negative-mining path.
    loss = jax.block_until_ready(
        triplet_loss(anchor, positive, negative, margin=0.3, hard_negative_mining=True))
    ref = _reference_triplet_loss(anchor, positive, negative, margin=0.3, hard=True)
    assert jnp.allclose(loss, ref, rtol=1e-4, atol=1e-4), (loss, ref)

    # Plain (non-mining) path.
    loss2 = jax.block_until_ready(
        triplet_loss(anchor, positive, negative, margin=0.3, hard_negative_mining=False))
    ref2 = _reference_triplet_loss(anchor, positive, negative, margin=0.3, hard=False)
    assert jnp.allclose(loss2, ref2, rtol=1e-4, atol=1e-4), (loss2, ref2)

    # Non-multiple-of-8 batch exercises padding + the baked-in negative mask.
    B2, D2 = 10, 48
    ka2, kp2, kn2 = jax.random.split(jax.random.PRNGKey(1), 3)
    a2 = jax.random.normal(ka2, (B2, D2), dtype=jnp.float32)
    p2 = jax.random.normal(kp2, (B2, D2), dtype=jnp.float32)
    n2 = jax.random.normal(kn2, (B2, D2), dtype=jnp.float32)
    loss3 = jax.block_until_ready(
        triplet_loss(a2, p2, n2, margin=0.3, hard_negative_mining=True))
    ref3 = _reference_triplet_loss(a2, p2, n2, margin=0.3, hard=True)
    assert jnp.allclose(loss3, ref3, rtol=1e-4, atol=1e-4), (loss3, ref3)

    # Larger batch exercises multi-block negatives (Buffered(3) path), the baked mask,
    # and the >=2-row-block megacore split.
    B3, D3 = 800, 64
    ka3, kp3, kn3 = jax.random.split(jax.random.PRNGKey(2), 3)
    a3 = jax.random.normal(ka3, (B3, D3), dtype=jnp.float32)
    p3 = jax.random.normal(kp3, (B3, D3), dtype=jnp.float32)
    n3 = jax.random.normal(kn3, (B3, D3), dtype=jnp.float32)
    loss4 = jax.block_until_ready(
        triplet_loss(a3, p3, n3, margin=0.3, hard_negative_mining=True))
    ref4 = _reference_triplet_loss(a3, p3, n3, margin=0.3, hard=True)
    assert jnp.allclose(loss4, ref4, rtol=1e-3, atol=5e-4), (loss4, ref4)

    print("KERNEL_OK")
</pallas_src>

<mosaic_0001>
module attributes {stable_mosaic.version = 11 : i64} {
  func.func @_hard_mining_kernel(%arg0: i32, %arg1: i32, %arg2: memref<8x32xf32, #tpu.memory_space<vmem>>, %arg3: memref<8x32xf32, #tpu.memory_space<vmem>>, %arg4: memref<1x8xf32, #tpu.memory_space<vmem>>, %arg5: memref<8x32xf32, #tpu.memory_space<vmem>>, %arg6: memref<8x1xf32, #tpu.memory_space<vmem>>, %arg7: memref<8x1xf32, #tpu.memory_space<vmem>>, %arg8: memref<8x1xf32, #tpu.memory_space<vmem>>, %arg9: memref<8x1xf32, #tpu.memory_space<vmem>>) attributes {dimension_semantics = [#tpu.dimension_semantics<parallel>, #tpu.dimension_semantics<arbitrary>], iteration_bounds = array<i64: 1, 1>, scalar_prefetch = 0 : i64, scratch_operands = 3 : i64, tpu.core_type = #tpu.core_type<tc>, window_params = [{transform_indices = @transform_0, window_bounds = array<i64: 8, 32>}, {transform_indices = @transform_1, window_bounds = array<i64: 8, 32>}, {transform_indices = @transform_2, window_bounds = array<i64: 1, 8>}, {transform_indices = @transform_3, window_bounds = array<i64: 8, 32>}, {transform_indices = @transform_4, window_bounds = array<i64: 8, 1>}]} {
    %c0_i32 = arith.constant 0 : i32
    %0 = arith.cmpi eq, %arg1, %c0_i32 : i32
    %1 = arith.extui %0 : i1 to i32
    %c0_i32_0 = arith.constant 0 : i32
    %2 = arith.cmpi ne, %1, %c0_i32_0 : i32
    scf.if %2 {
      %c0_13 = arith.constant 0 : index
      %c0_14 = arith.constant 0 : index
      %17 = vector.load %arg2[%c0_13, %c0_14] : memref<8x32xf32, #tpu.memory_space<vmem>>, vector<8x32xf32>
      %c0_15 = arith.constant 0 : index
      %c0_16 = arith.constant 0 : index
      %18 = vector.load %arg3[%c0_15, %c0_16] : memref<8x32xf32, #tpu.memory_space<vmem>>, vector<8x32xf32>
      %cst_17 = arith.constant 2.000000e-06 : f32
      %19 = vector.broadcast %cst_17 : f32 to vector<8x32xf32>
      %20 = arith.addf %17, %19 : vector<8x32xf32>
      %21 = arith.mulf %17, %20 : vector<8x32xf32>
      %cst_18 = arith.constant dense<0.000000e+00> : vector<8xf32>
      %22 = vector.multi_reduction <add>, %21, %cst_18 [1] : vector<8x32xf32> to vector<8xf32>
      %23 = vector.shape_cast %22 : vector<8xf32> to vector<8x1xf32>
      %c0_19 = arith.constant 0 : index
      %c0_20 = arith.constant 0 : index
      %24 = vector.load %arg8[%c0_19, %c0_20] : memref<8x1xf32, #tpu.memory_space<vmem>>, vector<8x1xf32>
      tpu.vector_store %arg8[%c0_19, %c0_20], %23 {strides = array<i32>} : memref<8x1xf32, #tpu.memory_space<vmem>>, vector<8x1xf32>,
      %25 = arith.subf %17, %18 : vector<8x32xf32>
      %cst_21 = arith.constant 9.99999997E-7 : f32
      %26 = vector.broadcast %cst_21 : f32 to vector<8x32xf32>
      %27 = arith.addf %25, %26 : vector<8x32xf32>
      %28 = arith.mulf %27, %27 : vector<8x32xf32>
      %cst_22 = arith.constant dense<0.000000e+00> : vector<8xf32>
      %29 = vector.multi_reduction <add>, %28, %cst_22 [1] : vector<8x32xf32> to vector<8xf32>
      %30 = vector.shape_cast %29 : vector<8xf32> to vector<8x1xf32>
      %31 = math.sqrt %30 : vector<8x1xf32>
      %c0_23 = arith.constant 0 : index
      %c0_24 = arith.constant 0 : index
      %32 = vector.load %arg9[%c0_23, %c0_24] : memref<8x1xf32, #tpu.memory_space<vmem>>, vector<8x1xf32>
      tpu.vector_store %arg9[%c0_23, %c0_24], %31 {strides = array<i32>} : memref<8x1xf32, #tpu.memory_space<vmem>>, vector<8x1xf32>,
      %cst_25 = arith.constant 1.000000e+30 : f32
      %33 = vector.broadcast %cst_25 : f32 to vector<8x1xf32>
      %c0_26 = arith.constant 0 : index
      %c0_27 = arith.constant 0 : index
      %34 = vector.load %arg7[%c0_26, %c0_27] : memref<8x1xf32, #tpu.memory_space<vmem>>, vector<8x1xf32>
      tpu.vector_store %arg7[%c0_26, %c0_27], %33 {strides = array<i32>} : memref<8x1xf32, #tpu.memory_space<vmem>>, vector<8x1xf32>,
    } else {
    }
    %c0 = arith.constant 0 : index
    %c0_1 = arith.constant 0 : index
    %3 = vector.load %arg2[%c0, %c0_1] : memref<8x32xf32, #tpu.memory_space<vmem>>, vector<8x32xf32>
    %c0_2 = arith.constant 0 : index
    %c0_3 = arith.constant 0 : index
    %4 = vector.load %arg5[%c0_2, %c0_3] : memref<8x32xf32, #tpu.memory_space<vmem>>, vector<8x32xf32>
    %cst = arith.constant dense<0.000000e+00> : vector<8x8xf32>
    %5 = tpu.matmul %3, %4, %cst {dimension_numbers = #tpu.dot_dimension_numbers<[1], [1], [0], [0], [0, 0, 1, 0], [], []>} : vector<8x32xf32>, vector<8x32xf32>, vector<8x8xf32> -> vector<8x8xf32>
    %c0_4 = arith.constant 0 : index
    %c0_5 = arith.constant 0 : index
    %6 = vector.load %arg4[%c0_4, %c0_5] : memref<1x8xf32, #tpu.memory_space<vmem>>, vector<1x8xf32>
    %7 = vector.broadcast %6 : vector<1x8xf32> to vector<8x8xf32>
    %8 = arith.subf %7, %5 : vector<8x8xf32>
    %cst_6 = arith.constant dense<0x7F800000> : vector<8xf32>
    %9 = vector.multi_reduction <minimumf>, %8, %cst_6 [1] : vector<8x8xf32> to vector<8xf32>
    %10 = vector.shape_cast %9 : vector<8xf32> to vector<8x1xf32>
    %c0_7 = arith.constant 0 : index
    %c0_8 = arith.constant 0 : index
    %11 = vector.load %arg7[%c0_7, %c0_8] : memref<8x1xf32, #tpu.memory_space<vmem>>, vector<8x1xf32>
    %12 = arith.minimumf %11, %10 : vector<8x1xf32>
    %c0_9 = arith.constant 0 : index
    %c0_10 = arith.constant 0 : index
    %13 = vector.load %arg7[%c0_9, %c0_10] : memref<8x1xf32, #tpu.memory_space<vmem>>, vector<8x1xf32>
    tpu.vector_store %arg7[%c0_9, %c0_10], %12 {strides = array<i32>} : memref<8x1xf32, #tpu.memory_space<vmem>>, vector<8x1xf32>,
    %c0_i32_11 = arith.constant 0 : i32
    %14 = arith.cmpi eq, %arg1, %c0_i32_11 : i32
    %15 = arith.extui %14 : i1 to i32
    %c0_i32_12 = arith.constant 0 : i32
    %16 = arith.cmpi ne, %15, %c0_i32_12 : i32
    scf.if %16 {
      %c0_13 = arith.constant 0 : index
      %c0_14 = arith.constant 0 : index
      %17 = vector.load %arg7[%c0_13, %c0_14] : memref<8x1xf32, #tpu.memory_space<vmem>>, vector<8x1xf32>
      %cst_15 = arith.constant 2.000000e+00 : f32
      %18 = vector.broadcast %cst_15 : f32 to vector<8x1xf32>
      %19 = arith.mulf %18, %17 : vector<8x1xf32>
      %c0_16 = arith.constant 0 : index
      %c0_17 = arith.constant 0 : index
      %20 = vector.load %arg8[%c0_16, %c0_17] : memref<8x1xf32, #tpu.memory_space<vmem>>, vector<8x1xf32>
      %21 = arith.addf %19, %20 : vector<8x1xf32>
      %cst_18 = arith.constant 3.200000e-11 : f32
      %22 = vector.broadcast %cst_18 : f32 to vector<8x1xf32>
      %23 = arith.addf %21, %22 : vector<8x1xf32>
      %cst_19 = arith.constant 0.000000e+00 : f32
      %24 = vector.broadcast %cst_19 : f32 to vector<8x1xf32>
      %25 = arith.maximumf %23, %24 : vector<8x1xf32>
      %26 = math.sqrt %25 : vector<8x1xf32>
      %c0_20 = arith.constant 0 : index
      %c0_21 = arith.constant 0 : index
      %27 = vector.load %arg9[%c0_20, %c0_21] : memref<8x1xf32, #tpu.memory_space<vmem>>, vector<8x1xf32>
      %28 = arith.subf %27, %26 : vector<8x1xf32>
      %cst_22 = arith.constant 3.000000e-01 : f32
      %29 = vector.broadcast %cst_22 : f32 to vector<8x1xf32>
      %30 = arith.addf %28, %29 : vector<8x1xf32>
      %cst_23 = arith.constant 0.000000e+00 : f32
      %31 = vector.broadcast %cst_23 : f32 to vector<8x1xf32>
      %32 = arith.maximumf %30, %31 : vector<8x1xf32>
      %c0_24 = arith.constant 0 : index
      %c0_25 = arith.constant 0 : index
      %33 = vector.load %arg6[%c0_24, %c0_25] : memref<8x1xf32, #tpu.memory_space<vmem>>, vector<8x1xf32>
      tpu.vector_store %arg6[%c0_24, %c0_25], %32 {strides = array<i32>} : memref<8x1xf32, #tpu.memory_space<vmem>>, vector<8x1xf32>,
    } else {
    }
    return
  }
  func.func @transform_0(%arg0: i32, %arg1: i32) -> (i32, i32) {
    %c0_i32 = arith.constant 0 : i32
    %c0_i32_0 = arith.constant 0 : i32
    return %arg0, %c0_i32 : i32, i32
  }
  func.func @transform_1(%arg0: i32, %arg1: i32) -> (i32, i32) {
    %c0_i32 = arith.constant 0 : i32
    %c0_i32_0 = arith.constant 0 : i32
    return %arg0, %c0_i32 : i32, i32
  }
  func.func @transform_2(%arg0: i32, %arg1: i32) -> (i32, i32) {
    %c0_i32 = arith.constant 0 : i32
    %c0_i32_0 = arith.constant 0 : i32
    return %c0_i32, %arg1 : i32, i32
  }
  func.func @transform_3(%arg0: i32, %arg1: i32) -> (i32, i32) {
    %c0_i32 = arith.constant 0 : i32
    %c0_i32_0 = arith.constant 0 : i32
    return %arg1, %c0_i32 : i32, i32
  }
  func.func @transform_4(%arg0: i32, %arg1: i32) -> (i32, i32) {
    %c0_i32 = arith.constant 0 : i32
    %c0_i32_0 = arith.constant 0 : i32
    return %arg0, %c0_i32 : i32, i32
  }
}

</mosaic_0001>

<llo_original>
// kernel: tpu_custom_call.1
$region0: #{tpu_custom_call.1}
  #allocation0 [shape = 'u32[]', space=smem, size = 0x4, offset = 0x4, fixed_abs, tag = 'smem constant byte address 0x4 - core index']
  #allocation1 [shape = 'u32[144,128]{1,0:T(1,128)}', space=vmem, size = 0x12000, scoped, tag = 'internal scratch']
  #allocation2 [shape = 'f32[8,1]{1,0:T(8,128)}', space=vmem, size = 0x1000, scoped, tag = 'scratch operand']
  #allocation3 [shape = 'f32[8,1]{1,0:T(8,128)}', space=vmem, size = 0x1000, scoped, tag = 'scratch operand']
  #allocation4 [shape = 'f32[8,1]{1,0:T(8,128)}', space=vmem, size = 0x1000, scoped, tag = 'scratch operand']
  %s0 = inlined_call_operand.hbm [shape: f32[8,32], index: 0, kind: input, shape index: {}]
  %s1 = inlined_call_operand.hbm [shape: f32[8,32], index: 1, kind: input, shape index: {}]
  %s2 = inlined_call_operand.vmem [shape: f32[1,8], index: 2, kind: input, shape index: {}]
  %s3 = inlined_call_operand.vmem [shape: f32[8,32], index: 3, kind: input, shape index: {}]
  %s4 = inlined_call_operand.vmem [shape: f32[8,1], index: 4, kind: output, shape index: {}]
  %s5 = sld [smem:[#allocation0]]
  $region42: #{tpu_custom_call.1} parent=0
    _
  %s7 = ssub.s32 1, %s5
  %s8 = scalar_select 0, %s7, %s5
  $region1: #{tpu_custom_call.1} parent=0
    #allocation5 [shape = 'u8[4096]{0}', space=vmem, size = 0x1000, scoped, tag = 'input window, operand 0, single buffered']
    #allocation6 [shape = 's32[1]{0}', space=sflag, size = 0x4, scoped, tag = 'scoped memory for tpu_custom_call.1']
    #allocation7 [shape = 'u8[4096]{0}', space=vmem, size = 0x1000, scoped, tag = 'input window, operand 1, single buffered']
    #allocation8 [shape = 's32[1]{0}', space=sflag, size = 0x4, scoped, tag = 'scoped memory for tpu_custom_call.1']
    %9 = vsyncpa [#allocation6], 0
    %10 = vsyncpa [#allocation8], 0
    // Predicated region
    $region2: #{tpu_custom_call.1} parent=1 // pred_check
      _
    $region3: #{tpu_custom_call.1} parent=1 // pred_check_branch
      %12 = sbr.rel (0) target = $region5
    $region4: #{tpu_custom_call.1} parent=1 // pred_region
      %s14 = ssub.s32 128, 128
      %15 = vsyncadd [#allocation6], %s14
      %s17 = sshll.u32 [#allocation5], 4
      %s18 = int_to_ptr.vmem [resolvable:$true] %s17
      %20 = dma.hbm_to_vmem [thread:$0]  %s0, 128, %s18, [#allocation6]
    $region5: #{tpu_custom_call.1} parent=1 // pred_fallthru
      _
    // Predicated region
    $region6: #{tpu_custom_call.1} parent=1 // pred_check
      _
    $region7: #{tpu_custom_call.1} parent=1 // pred_check_branch
      %22 = sbr.rel (0) target = $region9
    $region8: #{tpu_custom_call.1} parent=1 // pred_region
      %s24 = ssub.s32 128, 128
      %25 = vsyncadd [#allocation8], %s24
      %s27 = sshll.u32 [#allocation7], 4
      %s28 = int_to_ptr.vmem [resolvable:$true] %s27
      %30 = dma.hbm_to_vmem [thread:$0]  %s1, 128, %s28, [#allocation8]
    $region9: #{tpu_custom_call.1} parent=1 // pred_fallthru
      _
    // Predicated region
    $region10: #{tpu_custom_call.1} parent=1 // pred_check
      _
    $region11: #{tpu_custom_call.1} parent=1 // pred_check_branch
      %32 = sbr.rel (0) target = $region13
    $region12: #{tpu_custom_call.1} parent=1 // pred_region
      _
    $region13: #{tpu_custom_call.1} parent=1 // pred_fallthru
      _
    // Predicated region
    $region14: #{tpu_custom_call.1} parent=1 // pred_check
      _
    $region15: #{tpu_custom_call.1} parent=1 // pred_check_branch
      %34 = sbr.rel (0) target = $region17
    $region16: #{tpu_custom_call.1} parent=1 // pred_region
      _
    $region17: #{tpu_custom_call.1} parent=1 // pred_fallthru
      _
    // Predicated region
    $region18: #{tpu_custom_call.1} parent=1 // pred_check
      _
    $region19: #{tpu_custom_call.1} parent=1 // pred_check_branch
      %36 = sbr.rel (0) target = $region21
    $region20: #{tpu_custom_call.1} parent=1 // pred_region
      %37 = dma.done [#allocation6], 128
    $region21: #{tpu_custom_call.1} parent=1 // pred_fallthru
      _
    // Predicated region
    $region22: #{tpu_custom_call.1} parent=1 // pred_check
      _
    $region23: #{tpu_custom_call.1} parent=1 // pred_check_branch
      %39 = sbr.rel (0) target = $region25
    $region24: #{tpu_custom_call.1} parent=1 // pred_region
      %40 = dma.done [#allocation8], 128
    $region25: #{tpu_custom_call.1} parent=1 // pred_fallthru
      _
    %p41 = scmp.eq.s32.totalorder 0, 0
    // Predicated region
    $region26: #{tpu_custom_call.1} parent=1 // pred_check
      %p42 = pneg %p41
    $region27: #{tpu_custom_call.1} parent=1 // pred_check_branch
      %44 = sbr.rel (%p42) target = $region29
    $region28: #{tpu_custom_call.1} parent=1 // pred_region
      %v45 = vld [vmem:[#allocation5] sm:$0xff]
      %v46 = vld [vmem:[#allocation7] sm:$0xff]
      %v47 = vadd.f32 %v45, 2e-06
      %v48 = vmul.f32 %v45, %v47
      %vm49 = vcmask 261120
      %v50 = vsel %vm49, %v48, 0.0
      %51 = vadd.xlane.f32.xlu0 %v50
      %v52 = vpop.xlane.xlu0 %51
      %vm53 = vcmask 7168
      %54 = vst.msk [vmem:[#allocation3] sm:$0xff] %vm53, %v52
      %v55 = vsub.f32 %v45, %v46
      %v56 = vadd.f32 %v55, 1e-06
      %v57 = vmul.f32 %v56, %v56
      %v58 = vsel %vm49, %v57, 0.0
      %59 = vadd.xlane.f32.xlu0 %v58
      %v60 = vpop.xlane.xlu0 %59
      %v61 = vrsqrt.pop %v60
      %v62 = vmul.f32 %v60, %v61
      %vm63 = vcmp.eq.f32.partialorder %v60, inf
      %v64 = vsel %vm63, %v60, %v62
      %vm65 = vcmp.eq.f32.partialorder %v60, 0.0
      %v66 = vand.u32 %v60, 2147483648
      %v67 = vsel %vm65, %v66, %v64
      %68 = vst.msk [vmem:[#allocation4] sm:$0xff] %vm53, %v67
      %69 = vst.msk [vmem:[#allocation2] sm:$0xff] %vm53, 1e+30
    $region29: #{tpu_custom_call.1} parent=1 // pred_fallthru
      _
    %v70 = vld [vmem:[#allocation5] sm:$0xff]
    %v71 = vld [vmem:[%s3] sm:$0xff]
    %vm72 = vcmask 261120
    %v74 = vsel %vm72, %v70, 0
    %v77 = vsel %vm72, %v71, 0
    %79 = vmatprep.subr.mxu0 0.0
    %80 = vmatpush1.xpose.msra.mxu0 %v77
    %81 = vmatprep.subr.mxu0 0.0
    %82 = vmatpush1.xpose.msra.mxu0 0.0
    %83 = vmatprep.subr.mxu0 0.0
    %84 = vmatpush1.xpose.msra.mxu0 0.0
    %85 = vmatprep.subr.mxu0 0.0
    %86 = vmatpush1.xpose.msra.mxu0 0.0
    %87 = vmatprep.subr.mxu0 0.0
    %88 = vmatpush1.xpose.msra.mxu0 0.0
    %89 = vmatprep.subr.mxu0 0.0
    %90 = vmatpush1.xpose.msra.mxu0 0.0
    %91 = vmatprep.subr.mxu0 0.0
    %92 = vmatpush1.xpose.msra.mxu0 0.0
    %93 = vmatprep.subr.mxu0 0.0
    %94 = vmatpush1.xpose.msra.mxu0 0.0
    %95 = vmatprep.subr.mxu0 0.0
    %96 = vmatpush1.xpose.msra.mxu0 0.0
    %97 = vmatprep.subr.mxu0 0.0
    %98 = vmatpush1.xpose.msra.mxu0 0.0
    %99 = vmatprep.subr.mxu0 0.0
    %100 = vmatpush1.xpose.msra.mxu0 0.0
    %101 = vmatprep.subr.mxu0 0.0
    %102 = vmatpush1.xpose.msra.mxu0 0.0
    %103 = vmatprep.subr.mxu0 0.0
    %104 = vmatpush1.xpose.msra.mxu0 0.0
    %105 = vmatprep.subr.mxu0 0.0
    %106 = vmatpush1.xpose.msra.mxu0 0.0
    %107 = vmatprep.subr.mxu0 0.0
    %108 = vmatpush1.xpose.msra.mxu0 0.0
    %109 = vmatprep.subr.mxu0 0.0
    %110 = vmatpush1.xpose.msra.mxu0 0.0
    %111 = vmatprep.subr.mxu0 0.0
    %112 = vmatpush1.xpose.msra.mxu0 0.0
    %113 = vmatprep.subr.mxu0 0.0
    %114 = vmatpush1.xpose.msra.mxu0 0.0
    %115 = vmatprep.subr.mxu0 0.0
    %116 = vmatpush1.xpose.msra.mxu0 0.0
    %117 = vmatprep.subr.mxu0 0.0
    %118 = vmatpush1.xpose.msra.mxu0 0.0
    %119 = vmatprep.subr.mxu0 0.0
    %120 = vmatpush1.xpose.msra.mxu0 0.0
    %121 = vmatprep.subr.mxu0 0.0
    %122 = vmatpush1.xpose.msra.mxu0 0.0
    %123 = vmatprep.subr.mxu0 0.0
    %124 = vmatpush1.xpose.msra.mxu0 0.0
    %125 = vmatprep.subr.mxu0 0.0
    %126 = vmatpush1.xpose.msra.mxu0 0.0
    %127 = vmatprep.subr.mxu0 0.0
    %128 = vmatpush1.xpose.msra.mxu0 0.0
    %129 = vmatprep.subr.mxu0 0.0
    %130 = vmatpush1.xpose.msra.mxu0 0.0
    %131 = vmatprep.subr.mxu0 0.0
    %132 = vmatpush1.xpose.msra.mxu0 0.0
    %133 = vmatprep.subr.mxu0 0.0
    %134 = vmatpush1.xpose.msra.mxu0 0.0
    %135 = vmatprep.subr.mxu0 0.0
    %136 = vmatpush1.xpose.msra.mxu0 0.0
    %137 = vmatprep.subr.mxu0 0.0
    %138 = vmatpush1.xpose.msra.mxu0 0.0
    %139 = vmatprep.subr.mxu0 0.0
    %140 = vmatpush1.xpose.msra.mxu0 0.0
    %141 = vmatprep.subr.mxu0 0.0
    %142 = vmatpush1.xpose.msra.mxu0 0.0
    %143 = vmatprep.mubr.f32.mxu0 0.0
    %144 = vmatmul.mubr.f32.gmra.mrb[0].mxu0 %v74
    %v145 = vpop.f32.mrb[0].mxu0
    %v146 = vadd.f32 0.0, %v145
    %v147 = vpop.f32.mrb[0].mxu0
    %148 = vdwg.mxu0
    %v149 = vld [vmem:[%s2] sm:$0x1]
    %v151 = vlaneseq
    %v152 = vshrl.u32 %v151, 7
    %v153 = vsub.s32 0, %v152
    %v154 = vrot.slane %v149, %v153
    %v156 = vsub.f32 %v154, %v146
    %vm157 = vcmask 64512
    %v158 = vsel %vm157, %v156, inf
    %159 = vmin.xlane.f32.xlu0 %v158
    %v160 = vpop.xlane.xlu0 %159
    %v161 = vld [vmem:[#allocation2] sm:$0xff]
    %v162 = vmin.f32 %v161, %v160
    %vm163 = vcmask 7168
    %164 = vst.msk [vmem:[#allocation2] sm:$0xff] %vm163, %v162
    // Predicated region
    $region30: #{tpu_custom_call.1} parent=1 // pred_check
      %p165 = pneg %p41
    $region31: #{tpu_custom_call.1} parent=1 // pred_check_branch
      %167 = sbr.rel (%p165) target = $region33
    $region32: #{tpu_custom_call.1} parent=1 // pred_region
      %v168 = vld [vmem:[#allocation2] sm:$0xff]
      %v169 = vmul.f32 %v168, 2.0
      %v170 = vld [vmem:[#allocation3] sm:$0xff]
      %v171 = vadd.f32 %v169, %v170
      %v172 = vadd.f32 %v171, 3.2e-11
      %v173 = vmax.f32 %v172, 0.0
      %v174 = vrsqrt.pop %v173
      %v175 = vmul.f32 %v173, %v174
      %vm176 = vcmp.eq.f32.partialorder %v173, inf
      %v177 = vsel %vm176, %v173, %v175
      %vm178 = vcmp.eq.f32.partialorder %v173, 0.0
      %v179 = vand.u32 %v173, 2147483648
      %v180 = vsel %vm178, %v179, %v177
      %v181 = vld [vmem:[#allocation4] sm:$0xff]
      %v182 = vsub.f32 %v181, %v180
      %v183 = vadd.f32 %v182, 0.3
      %v184 = vmax.f32 %v183, 0.0
      %185 = vst.msk [vmem:[%s4] sm:$0xff] %vm163, %v184
    $region33: #{tpu_custom_call.1} parent=1 // pred_fallthru
      _
    // Predicated region
    $region34: #{tpu_custom_call.1} parent=1 // pred_check
      _
    $region35: #{tpu_custom_call.1} parent=1 // pred_check_branch
      %187 = sbr.rel (0) target = $region37
    $region36: #{tpu_custom_call.1} parent=1 // pred_region
      _
    $region37: #{tpu_custom_call.1} parent=1 // pred_fallthru
      _
    // Predicated region
    $region38: #{tpu_custom_call.1} parent=1 // pred_check
      _
    $region39: #{tpu_custom_call.1} parent=1 // pred_check_branch
      %189 = sbr.rel (0) target = $region41
    $region40: #{tpu_custom_call.1} parent=1 // pred_region
      _
    $region41: #{tpu_custom_call.1} parent=1 // pred_fallthru
      _
    %190 = vsyncpa [#allocation6], 1
    %191 = vsyncpa [#allocation8], 1

</llo_original>
